<compile_context>
chip_gen: v6e
topology: v6e:2x2x1
jax: 0.10.0
libtpu: 0.0.40
codegen_flags: <defaults>
</compile_context>

<pallas_src>
import jax
import jax.numpy as jnp
from jax.experimental import pallas as pl
from jax.experimental.pallas import tpu as pltpu

BN_EPS = 1e-5   # nn.BatchNorm1d default
PD_EPS = 1e-6   # F.pairwise_distance default


def _bn_relu(h3, gamma, beta):
    """Training-mode BatchNorm1d + ReLU, per branch, on stacked activations.

    h3: (2, B, C) -- index 0 = branch 1, index 1 = branch 2.
    gamma / beta: (1, C) (broadcast over both branches).
    """
    mu = jnp.mean(h3, axis=1, keepdims=True)            # (2, 1, C)
    xc = h3 - mu                                        # reused for var & normalize
    var = jnp.mean(xc * xc, axis=1, keepdims=True)      # biased batch variance
    scale = gamma * jax.lax.rsqrt(var + BN_EPS)         # rsqrt -> EUP (free slot)
    return jnp.maximum(xc * scale + beta, 0.0)          # fused scale/shift + ReLU


def siamese_kernel(x_ref, w1bn_ref, w23_ref, out_ref):
    B = out_ref.shape[0]
    C = 32

    # ---- unpack the two packed constant operands (static slices) ----
    w1bn = w1bn_ref[...]                                 # (12, 32) f32
    w1 = w1bn[0:8]                                       # (8, 32); rows 5:8 are zero pad
    g1, be1 = w1bn[8:9], w1bn[9:10]                      # (1, 32) each
    g2, be2 = w1bn[10:11], w1bn[11:12]

    w23 = w23_ref[...]                                   # (32, 48) f32
    w2 = w23[:, 0:32]                                    # (32, 32)
    w3 = w23[:, 32:48]                                   # (32, 16)

    x = x_ref[...]                                       # (2B, 8); cols 5:8 are zero pad

    # ---- layer 1: one stacked MXU matmul for both branches (f32) ----
    # (b1 dropped: training-mode BN cancels it exactly.)
    h = jnp.dot(x, w1, preferred_element_type=jnp.float32)          # (2B, 32)
    h = _bn_relu(h.reshape(2, B, C), g1, be1)                       # (2, B, 32)

    # ---- layer 2: one stacked MXU matmul for both branches (f32) ----
    # (b2 dropped: cancelled by BN.)
    h = jnp.dot(h.reshape(2 * B, C), w2,
                preferred_element_type=jnp.float32)                 # (2B, 32)
    h = _bn_relu(h.reshape(2, B, C), g2, be2)                       # (2, B, 32)

    # ---- layer 3 folded into the distance ----
    # f1 - f2 = (h1 - h2) @ w3 exactly (b3 cancels): one (B,32)@(32,16) matmul.
    delta = h[0] - h[1]                                             # (B, 32)
    f = jnp.dot(delta, w3, preferred_element_type=jnp.float32)      # (B, 16)

    d = f + PD_EPS                                                  # pairwise_distance eps
    s = jnp.sum(d * d, axis=-1, keepdims=True)                      # (B, 1)
    # log(1/||d||) == -0.5 * log(sum(d^2))  -- sqrt+log fused into one log.
    out_ref[...] = -0.5 * jnp.log(s)


def prepare_params(params):
    """One-time packing of constants into the kernel's two weight operands."""
    (w1, b1, g1, be1, w2, b2, g2, be2, w3, b3) = params
    # Biases are mathematically dead: b1/b2 cancel under training-mode BN,
    # b3 cancels in f1 - f2.  Never shipped to the kernel.
    del b1, b2, b3
    w1_pad = jnp.zeros((8, 32), jnp.float32).at[:5, :].set(w1)       # K padded 5->8
    w1bn = jnp.concatenate([w1_pad, g1, be1, g2, be2], axis=0)       # (12, 32)
    w23 = jnp.concatenate([w2, w3], axis=1)                          # (32, 48)
    return w1bn, w23


def siamese_forward(x1, x2, prepped):
    w1bn, w23 = prepped
    B = x1.shape[0]
    # The (2B,C)->(2,B,C) BN reshape needs a sublane-tile-aligned split (f32).
    assert B % 8 == 0, "batch must be a multiple of 8 (f32 sublane tile)"

    # Stack both branches (and zero-pad the K=5 feature dim to 8) at the call
    # site: one input DMA instead of two, and no in-kernel concatenate.
    x = jnp.zeros((2 * B, 8), jnp.float32)
    x = x.at[:B, :5].set(x1).at[B:, :5].set(x2)

    return pl.pallas_call(
        siamese_kernel,
        out_shape=jax.ShapeDtypeStruct((B, 1), jnp.float32),
        # Grid-less call: whole arrays placed in VMEM, no pipelining machinery.
        in_specs=[pl.BlockSpec(memory_space=pltpu.MemorySpace.VMEM)
                  for _ in range(3)],
        out_specs=pl.BlockSpec(memory_space=pltpu.MemorySpace.VMEM),
    )(x, w1bn, w23)


def siamese_reference(x1, x2, params):
    """Straightforward f32 reproduction of the PyTorch forward (biases included)."""
    (w1, b1, g1, be1, w2, b2, g2, be2, w3, b3) = params

    def bn(h, gamma, beta):
        mu = jnp.mean(h, axis=0, keepdims=True)
        var = jnp.mean((h - mu) ** 2, axis=0, keepdims=True)
        return gamma * (h - mu) / jnp.sqrt(var + BN_EPS) + beta

    def branch(x):
        h = x @ w1 + b1
        h = jnp.maximum(bn(h, g1, be1), 0.0)
        h = h @ w2 + b2
        h = jnp.maximum(bn(h, g2, be2), 0.0)
        return h @ w3 + b3

    f1, f2 = branch(x1), branch(x2)
    d = f1 - f2 + PD_EPS
    dist = jnp.sqrt(jnp.sum(d * d, axis=-1, keepdims=True))
    return -jnp.log(dist)


def make_params(key):
    ks = jax.random.split(key, 6)
    # Linear(5, 32), Linear(32, 32), Linear(32, 16) — weights stored as (in, out).
    # (Transpose when importing real nn.Linear weights, which are (out, in).)
    w1 = jax.random.normal(ks[0], (5, 32), jnp.float32) * 0.3
    b1 = jax.random.normal(ks[1], (1, 32), jnp.float32) * 0.1
    w2 = jax.random.normal(ks[2], (32, 32), jnp.float32) * 0.2
    b2 = jax.random.normal(ks[3], (1, 32), jnp.float32) * 0.1
    w3 = jax.random.normal(ks[4], (32, 16), jnp.float32) * 0.2
    b3 = jax.random.normal(ks[5], (1, 16), jnp.float32) * 0.1
    # BatchNorm affine params (PyTorch default init: gamma=1, beta=0).
    g1 = jnp.ones((1, 32), jnp.float32)
    be1 = jnp.zeros((1, 32), jnp.float32)
    g2 = jnp.ones((1, 32), jnp.float32)
    be2 = jnp.zeros((1, 32), jnp.float32)
    return (w1, b1, g1, be1, w2, b2, g2, be2, w3, b3)


if __name__ == "__main__":
    key = jax.random.PRNGKey(0)
    k_in1, k_in2, k_par = jax.random.split(key, 3)

    B = 8
    x1 = jax.random.normal(k_in1, (B, 5), jnp.float32)
    x2 = jax.random.normal(k_in2, (B, 5), jnp.float32)
    params = make_params(k_par)

    prepped = prepare_params(params)           # one-time constant packing
    out = siamese_forward(x1, x2, prepped)
    out = jax.block_until_ready(out)

    ref = siamese_reference(x1, x2, params)
    assert out.shape == (B, 1)
    # All-f32 matmuls: only rounding-order / EUP-rsqrt differences remain
    # (bitwise equality vs. the reference is not expected, but 1e-4 is).
    assert jnp.allclose(out, ref, rtol=1e-4, atol=1e-4), (out, ref)

    print("KERNEL_OK")
</pallas_src>

<mosaic_0001>
module attributes {stable_mosaic.version = 11 : i64} {
  func.func @siamese_kernel(%arg0: memref<16x8xf32, #tpu.memory_space<vmem>>, %arg1: memref<12x32xf32, #tpu.memory_space<vmem>>, %arg2: memref<32x48xf32, #tpu.memory_space<vmem>>, %arg3: memref<8x1xf32, #tpu.memory_space<vmem>>) attributes {dimension_semantics = [], scalar_prefetch = 0 : i64, scratch_operands = 0 : i64, tpu.core_type = #tpu.core_type<tc>} {
    %c0 = arith.constant 0 : index
    %c0_0 = arith.constant 0 : index
    %0 = vector.load %arg1[%c0, %c0_0] : memref<12x32xf32, #tpu.memory_space<vmem>>, vector<12x32xf32>
    %1 = vector.extract_strided_slice %0 {offsets = [0, 0], sizes = [8, 32], strides = [1, 1]} : vector<12x32xf32> to vector<8x32xf32>
    %2 = vector.extract_strided_slice %0 {offsets = [8, 0], sizes = [1, 32], strides = [1, 1]} : vector<12x32xf32> to vector<1x32xf32>
    %3 = vector.extract_strided_slice %0 {offsets = [9, 0], sizes = [1, 32], strides = [1, 1]} : vector<12x32xf32> to vector<1x32xf32>
    %4 = vector.extract_strided_slice %0 {offsets = [10, 0], sizes = [1, 32], strides = [1, 1]} : vector<12x32xf32> to vector<1x32xf32>
    %5 = vector.extract_strided_slice %0 {offsets = [11, 0], sizes = [1, 32], strides = [1, 1]} : vector<12x32xf32> to vector<1x32xf32>
    %c0_1 = arith.constant 0 : index
    %c0_2 = arith.constant 0 : index
    %6 = vector.load %arg2[%c0_1, %c0_2] : memref<32x48xf32, #tpu.memory_space<vmem>>, vector<32x48xf32>
    %7 = vector.extract_strided_slice %6 {offsets = [0, 0], sizes = [32, 32], strides = [1, 1]} : vector<32x48xf32> to vector<32x32xf32>
    %8 = vector.extract_strided_slice %6 {offsets = [0, 32], sizes = [32, 16], strides = [1, 1]} : vector<32x48xf32> to vector<32x16xf32>
    %c0_3 = arith.constant 0 : index
    %c0_4 = arith.constant 0 : index
    %9 = vector.load %arg0[%c0_3, %c0_4] : memref<16x8xf32, #tpu.memory_space<vmem>>, vector<16x8xf32>
    %cst = arith.constant dense<0.000000e+00> : vector<16x32xf32>
    %10 = tpu.matmul %9, %1, %cst {dimension_numbers = #tpu.dot_dimension_numbers<[1], [0], [0], [1], [0, 0, 1, 1], [], []>} : vector<16x8xf32>, vector<8x32xf32>, vector<16x32xf32> -> vector<16x32xf32>
    %11 = vector.shape_cast %10 : vector<16x32xf32> to vector<2x8x32xf32>
    %cst_5 = arith.constant dense<0.000000e+00> : vector<2x32xf32>
    %12 = vector.multi_reduction <add>, %11, %cst_5 [1] : vector<2x8x32xf32> to vector<2x32xf32>
    %13 = vector.shape_cast %12 : vector<2x32xf32> to vector<2x1x32xf32>
    %cst_6 = arith.constant 8.000000e+00 : f32
    %14 = vector.broadcast %cst_6 : f32 to vector<2x1x32xf32>
    %15 = arith.divf %13, %14 : vector<2x1x32xf32>
    %16 = vector.broadcast %15 : vector<2x1x32xf32> to vector<2x8x32xf32>
    %17 = arith.subf %11, %16 : vector<2x8x32xf32>
    %18 = arith.mulf %17, %17 : vector<2x8x32xf32>
    %cst_7 = arith.constant dense<0.000000e+00> : vector<2x32xf32>
    %19 = vector.multi_reduction <add>, %18, %cst_7 [1] : vector<2x8x32xf32> to vector<2x32xf32>
    %20 = vector.shape_cast %19 : vector<2x32xf32> to vector<2x1x32xf32>
    %cst_8 = arith.constant 8.000000e+00 : f32
    %21 = vector.broadcast %cst_8 : f32 to vector<2x1x32xf32>
    %22 = arith.divf %20, %21 : vector<2x1x32xf32>
    %cst_9 = arith.constant 9.99999974E-6 : f32
    %23 = vector.broadcast %cst_9 : f32 to vector<2x1x32xf32>
    %24 = arith.addf %22, %23 : vector<2x1x32xf32>
    %25 = math.rsqrt %24 : vector<2x1x32xf32>
    %26 = vector.shape_cast %2 : vector<1x32xf32> to vector<1x1x32xf32>
    %27 = vector.broadcast %26 : vector<1x1x32xf32> to vector<2x1x32xf32>
    %28 = arith.mulf %27, %25 : vector<2x1x32xf32>
    %29 = vector.broadcast %28 : vector<2x1x32xf32> to vector<2x8x32xf32>
    %30 = arith.mulf %17, %29 : vector<2x8x32xf32>
    %31 = vector.shape_cast %3 : vector<1x32xf32> to vector<1x1x32xf32>
    %32 = vector.broadcast %31 : vector<1x1x32xf32> to vector<2x8x32xf32>
    %33 = arith.addf %30, %32 : vector<2x8x32xf32>
    %cst_10 = arith.constant 0.000000e+00 : f32
    %34 = vector.broadcast %cst_10 : f32 to vector<2x8x32xf32>
    %35 = arith.maximumf %33, %34 : vector<2x8x32xf32>
    %36 = vector.shape_cast %35 : vector<2x8x32xf32> to vector<16x32xf32>
    %cst_11 = arith.constant dense<0.000000e+00> : vector<16x32xf32>
    %37 = tpu.matmul %36, %7, %cst_11 {dimension_numbers = #tpu.dot_dimension_numbers<[1], [0], [0], [1], [0, 0, 1, 1], [], []>} : vector<16x32xf32>, vector<32x32xf32>, vector<16x32xf32> -> vector<16x32xf32>
    %38 = vector.shape_cast %37 : vector<16x32xf32> to vector<2x8x32xf32>
    %cst_12 = arith.constant dense<0.000000e+00> : vector<2x32xf32>
    %39 = vector.multi_reduction <add>, %38, %cst_12 [1] : vector<2x8x32xf32> to vector<2x32xf32>
    %40 = vector.shape_cast %39 : vector<2x32xf32> to vector<2x1x32xf32>
    %cst_13 = arith.constant 8.000000e+00 : f32
    %41 = vector.broadcast %cst_13 : f32 to vector<2x1x32xf32>
    %42 = arith.divf %40, %41 : vector<2x1x32xf32>
    %43 = vector.broadcast %42 : vector<2x1x32xf32> to vector<2x8x32xf32>
    %44 = arith.subf %38, %43 : vector<2x8x32xf32>
    %45 = arith.mulf %44, %44 : vector<2x8x32xf32>
    %cst_14 = arith.constant dense<0.000000e+00> : vector<2x32xf32>
    %46 = vector.multi_reduction <add>, %45, %cst_14 [1] : vector<2x8x32xf32> to vector<2x32xf32>
    %47 = vector.shape_cast %46 : vector<2x32xf32> to vector<2x1x32xf32>
    %cst_15 = arith.constant 8.000000e+00 : f32
    %48 = vector.broadcast %cst_15 : f32 to vector<2x1x32xf32>
    %49 = arith.divf %47, %48 : vector<2x1x32xf32>
    %cst_16 = arith.constant 9.99999974E-6 : f32
    %50 = vector.broadcast %cst_16 : f32 to vector<2x1x32xf32>
    %51 = arith.addf %49, %50 : vector<2x1x32xf32>
    %52 = math.rsqrt %51 : vector<2x1x32xf32>
    %53 = vector.shape_cast %4 : vector<1x32xf32> to vector<1x1x32xf32>
    %54 = vector.broadcast %53 : vector<1x1x32xf32> to vector<2x1x32xf32>
    %55 = arith.mulf %54, %52 : vector<2x1x32xf32>
    %56 = vector.broadcast %55 : vector<2x1x32xf32> to vector<2x8x32xf32>
    %57 = arith.mulf %44, %56 : vector<2x8x32xf32>
    %58 = vector.shape_cast %5 : vector<1x32xf32> to vector<1x1x32xf32>
    %59 = vector.broadcast %58 : vector<1x1x32xf32> to vector<2x8x32xf32>
    %60 = arith.addf %57, %59 : vector<2x8x32xf32>
    %cst_17 = arith.constant 0.000000e+00 : f32
    %61 = vector.broadcast %cst_17 : f32 to vector<2x8x32xf32>
    %62 = arith.maximumf %60, %61 : vector<2x8x32xf32>
    %63 = vector.extract_strided_slice %62 {offsets = [0, 0, 0], sizes = [1, 8, 32], strides = [1, 1, 1]} : vector<2x8x32xf32> to vector<1x8x32xf32>
    %64 = vector.shape_cast %63 : vector<1x8x32xf32> to vector<8x32xf32>
    %65 = vector.extract_strided_slice %62 {offsets = [1, 0, 0], sizes = [1, 8, 32], strides = [1, 1, 1]} : vector<2x8x32xf32> to vector<1x8x32xf32>
    %66 = vector.shape_cast %65 : vector<1x8x32xf32> to vector<8x32xf32>
    %67 = arith.subf %64, %66 : vector<8x32xf32>
    %cst_18 = arith.constant dense<0.000000e+00> : vector<8x16xf32>
    %68 = tpu.matmul %67, %8, %cst_18 {dimension_numbers = #tpu.dot_dimension_numbers<[1], [0], [0], [1], [0, 0, 1, 1], [], []>} : vector<8x32xf32>, vector<32x16xf32>, vector<8x16xf32> -> vector<8x16xf32>
    %cst_19 = arith.constant 9.99999997E-7 : f32
    %69 = vector.broadcast %cst_19 : f32 to vector<8x16xf32>
    %70 = arith.addf %68, %69 : vector<8x16xf32>
    %71 = arith.mulf %70, %70 : vector<8x16xf32>
    %cst_20 = arith.constant dense<0.000000e+00> : vector<8xf32>
    %72 = vector.multi_reduction <add>, %71, %cst_20 [1] : vector<8x16xf32> to vector<8xf32>
    %73 = vector.shape_cast %72 : vector<8xf32> to vector<8x1xf32>
    %74 = math.log %73 : vector<8x1xf32>
    %cst_21 = arith.constant -5.000000e-01 : f32
    %75 = vector.broadcast %cst_21 : f32 to vector<8x1xf32>
    %76 = arith.mulf %75, %74 : vector<8x1xf32>
    %c0_22 = arith.constant 0 : index
    %c0_23 = arith.constant 0 : index
    %77 = vector.load %arg3[%c0_22, %c0_23] : memref<8x1xf32, #tpu.memory_space<vmem>>, vector<8x1xf32>
    tpu.vector_store %arg3[%c0_22, %c0_23], %76 {strides = array<i32>} : memref<8x1xf32, #tpu.memory_space<vmem>>, vector<8x1xf32>,
    return
  }
}

</mosaic_0001>

<llo_original>
// kernel: tpu_custom_call.1
$region0: #{tpu_custom_call.1}
  #allocation0 [shape = 'u32[]', space=smem, size = 0x4, offset = 0x4, fixed_abs, tag = 'smem constant byte address 0x4 - core index']
  #allocation1 [shape = 'u32[144,128]{1,0:T(1,128)}', space=vmem, size = 0x12000, scoped, tag = 'internal scratch']
  %s0 = inlined_call_operand.vmem [shape: f32[16,8], index: 0, kind: input, shape index: {}]
  %s1 = inlined_call_operand.vmem [shape: f32[12,32], index: 1, kind: input, shape index: {}]
  %s2 = inlined_call_operand.hbm [shape: f32[32,48], index: 2, kind: input, shape index: {}]
  %s3 = inlined_call_operand.vmem [shape: f32[8,1], index: 3, kind: output, shape index: {}]
  %s4 = sld [smem:[#allocation0]]
  $region26: #{tpu_custom_call.1} parent=0
    _
  %s6 = ssub.s32 1, %s4
  %s7 = scalar_select 0, %s6, %s4
  $region1: #{tpu_custom_call.1} parent=0
    #allocation2 [shape = 'u8[16384]{0}', space=vmem, size = 0x4000, scoped, tag = 'input window, operand 2, single buffered']
    #allocation3 [shape = 's32[1]{0}', space=sflag, size = 0x4, scoped, tag = 'scoped memory for tpu_custom_call.1']
    %8 = vsyncpa [#allocation3], 0
    // Predicated region
    $region2: #{tpu_custom_call.1} parent=1 // pred_check
      _
    $region3: #{tpu_custom_call.1} parent=1 // pred_check_branch
      %10 = sbr.rel (0) target = $region5
    $region4: #{tpu_custom_call.1} parent=1 // pred_region
      _
    $region5: #{tpu_custom_call.1} parent=1 // pred_fallthru
      _
    // Predicated region
    $region6: #{tpu_custom_call.1} parent=1 // pred_check
      _
    $region7: #{tpu_custom_call.1} parent=1 // pred_check_branch
      %12 = sbr.rel (0) target = $region9
    $region8: #{tpu_custom_call.1} parent=1 // pred_region
      _
    $region9: #{tpu_custom_call.1} parent=1 // pred_fallthru
      _
    // Predicated region
    $region10: #{tpu_custom_call.1} parent=1 // pred_check
      _
    $region11: #{tpu_custom_call.1} parent=1 // pred_check_branch
      %14 = sbr.rel (0) target = $region13
    $region12: #{tpu_custom_call.1} parent=1 // pred_region
      %s16 = ssub.s32 512, 512
      %17 = vsyncadd [#allocation3], %s16
      %s18 = sshll.u32 [#allocation2], 4
      %s19 = int_to_ptr.vmem [resolvable:$true] %s18
      %24 = dma.hbm_to_vmem [thread:$0]  %s2, 512, %s19, [#allocation3], 128, 128, 8
    $region13: #{tpu_custom_call.1} parent=1 // pred_fallthru
      _
    // Predicated region
    $region14: #{tpu_custom_call.1} parent=1 // pred_check
      _
    $region15: #{tpu_custom_call.1} parent=1 // pred_check_branch
      %26 = sbr.rel (0) target = $region17
    $region16: #{tpu_custom_call.1} parent=1 // pred_region
      %27 = dma.done [#allocation3], 512
    $region17: #{tpu_custom_call.1} parent=1 // pred_fallthru
      _
    %v28 = vld [vmem:[%s1] sm:$0xff]
    %v29 = vld [vmem:[%s1 + $0x8] sm:$0xf]
    %v30 = vld [vmem:[#allocation2] sm:$0xff]
    %v31 = vld [vmem:[#allocation2 + $0x8] sm:$0xff]
    %v32 = vld [vmem:[#allocation2 + $0x10] sm:$0xff]
    %v33 = vld [vmem:[#allocation2 + $0x18] sm:$0xff]
    %v34 = vld [vmem:[%s0] sm:$0xff]
    %v35 = vld [vmem:[%s0 + $0x8] sm:$0xff]
    %vm36 = vcmask 64512
    %v38 = vsel %vm36, %v34, 0
    %v41 = vsel %vm36, %v35, 0
    %43 = vmatprep.subr.mxu0 0.0
    %44 = vmatpush1.msra.mxu0 0.0
    %45 = vmatprep.subr.mxu0 0.0
    %46 = vmatpush1.msra.mxu0 0.0
    %47 = vmatprep.subr.mxu0 0.0
    %48 = vmatpush1.msra.mxu0 0.0
    %49 = vmatprep.subr.mxu0 0.0
    %50 = vmatpush1.msra.mxu0 0.0
    %51 = vmatprep.subr.mxu0 0.0
    %52 = vmatpush1.msra.mxu0 0.0
    %53 = vmatprep.subr.mxu0 0.0
    %54 = vmatpush1.msra.mxu0 0.0
    %55 = vmatprep.subr.mxu0 0.0
    %56 = vmatpush1.msra.mxu0 0.0
    %57 = vmatprep.subr.mxu0 0.0
    %58 = vmatpush1.msra.mxu0 0.0
    %59 = vmatprep.subr.mxu0 0.0
    %60 = vmatpush1.msra.mxu0 0.0
    %61 = vmatprep.subr.mxu0 0.0
    %62 = vmatpush1.msra.mxu0 0.0
    %63 = vmatprep.subr.mxu0 0.0
    %64 = vmatpush1.msra.mxu0 0.0
    %65 = vmatprep.subr.mxu0 0.0
    %66 = vmatpush1.msra.mxu0 0.0
    %67 = vmatprep.subr.mxu0 0.0
    %68 = vmatpush1.msra.mxu0 0.0
    %69 = vmatprep.subr.mxu0 0.0
    %70 = vmatpush1.msra.mxu0 0.0
    %71 = vmatprep.subr.mxu0 0.0
    %72 = vmatpush1.msra.mxu0 0.0
    %73 = vmatprep.subr.mxu0 0.0
    %74 = vmatpush1.msra.mxu0 %v28
    %75 = vmatprep.subr.mxu0 0.0
    %76 = vmatpush2.msra.mxu0 0.0
    %77 = vmatprep.subr.mxu0 0.0
    %78 = vmatpush2.msra.mxu0 0.0
    %79 = vmatprep.subr.mxu0 0.0
    %80 = vmatpush2.msra.mxu0 0.0
    %81 = vmatprep.subr.mxu0 0.0
    %82 = vmatpush2.msra.mxu0 0.0
    %83 = vmatprep.subr.mxu0 0.0
    %84 = vmatpush2.msra.mxu0 0.0
    %85 = vmatprep.subr.mxu0 0.0
    %86 = vmatpush2.msra.mxu0 0.0
    %87 = vmatprep.subr.mxu0 0.0
    %88 = vmatpush2.msra.mxu0 0.0
    %89 = vmatprep.subr.mxu0 0.0
    %90 = vmatpush2.msra.mxu0 0.0
    %91 = vmatprep.subr.mxu0 0.0
    %92 = vmatpush2.msra.mxu0 0.0
    %93 = vmatprep.subr.mxu0 0.0
    %94 = vmatpush2.msra.mxu0 0.0
    %95 = vmatprep.subr.mxu0 0.0
    %96 = vmatpush2.msra.mxu0 0.0
    %97 = vmatprep.subr.mxu0 0.0
    %98 = vmatpush2.msra.mxu0 0.0
    %99 = vmatprep.subr.mxu0 0.0
    %100 = vmatpush2.msra.mxu0 0.0
    %101 = vmatprep.subr.mxu0 0.0
    %102 = vmatpush2.msra.mxu0 0.0
    %103 = vmatprep.subr.mxu0 0.0
    %104 = vmatpush2.msra.mxu0 0.0
    %105 = vmatprep.subr.mxu0 0.0
    %106 = vmatpush2.msra.mxu0 0.0
    %107 = vmatprep.mubr.f32.mxu0 0.0
    %108 = vmatmul.mubr.f32.gmra.mxu0 %v38
    %v109 = vpop.f32.mrf.mxu0
    %v110 = vadd.f32 0.0, %v109
    %v111 = vpop.f32.mrf.mxu0
    %112 = vmatprep.mubr.f32.mxu0 0.0
    %113 = vmatmul.mubr.f32.gmra.mxu0 %v41
    %v114 = vpop.f32.mrf.mxu0
    %v115 = vadd.f32 0.0, %v114
    %v116 = vpop.f32.mrf.mxu0
    %117 = vdwg.mxu0
    %vm118 = vcmask 261120
    %v119 = vsel %vm118, %v110, 0.0
    %v120 = vrot.slane %v119, 4
    %v121 = vadd.f32 %v119, %v120
    %v122 = vrot.slane %v121, 2
    %v123 = vadd.f32 %v121, %v122
    %v124 = vrot.slane %v123, 1
    %v125 = vadd.f32 %v123, %v124
    %v126 = vsel %vm118, %v115, 0.0
    %v127 = vrot.slane %v126, 4
    %v128 = vadd.f32 %v126, %v127
    %v129 = vrot.slane %v128, 2
    %v130 = vadd.f32 %v128, %v129
    %v131 = vrot.slane %v130, 1
    %v132 = vadd.f32 %v130, %v131
    %v133 = vrcp.pop 8.0
    %v134 = vmul.f32 %v125, %v133
    %v135 = vmul.f32 %v132, %v133
    %v136 = vsub.f32 %v110, %v134
    %v137 = vsub.f32 %v115, %v135
    %v138 = vmul.f32 %v136, %v136
    %v139 = vmul.f32 %v137, %v137
    %v140 = vsel %vm118, %v138, 0.0
    %v141 = vrot.slane %v140, 4
    %v142 = vadd.f32 %v140, %v141
    %v143 = vrot.slane %v142, 2
    %v144 = vadd.f32 %v142, %v143
    %v145 = vrot.slane %v144, 1
    %v146 = vadd.f32 %v144, %v145
    %v147 = vsel %vm118, %v139, 0.0
    %v148 = vrot.slane %v147, 4
    %v149 = vadd.f32 %v147, %v148
    %v150 = vrot.slane %v149, 2
    %v151 = vadd.f32 %v149, %v150
    %v152 = vrot.slane %v151, 1
    %v153 = vadd.f32 %v151, %v152
    %v154 = vmul.f32 %v146, %v133
    %v155 = vmul.f32 %v153, %v133
    %v156 = vadd.f32 %v154, 1e-05
    %v157 = vadd.f32 %v155, 1e-05
    %v158 = vrsqrt.pop %v156
    %v159 = vrsqrt.pop %v157
    %v160 = vmul.f32 %v29, %v158
    %v161 = vmul.f32 %v29, %v159
    %v162 = vlaneseq
    %v163 = vshrl.u32 %v162, 7
    %v164 = vsub.s32 0, %v163
    %v165 = vrot.slane %v160, %v164
    %v166 = vlaneseq
    %v167 = vshrl.u32 %v166, 7
    %v168 = vsub.s32 0, %v167
    %v169 = vrot.slane %v161, %v168
    %v170 = vmul.f32 %v136, %v165
    %v171 = vmul.f32 %v137, %v169
    %v172 = vlaneseq
    %v173 = vshrl.u32 %v172, 7
    %v174 = vsub.s32 1, %v173
    %v175 = vrot.slane %v29, %v174
    %v176 = vadd.f32 %v170, %v175
    %v177 = vadd.f32 %v171, %v175
    %v178 = vmax.f32 %v176, 0.0
    %v179 = vmax.f32 %v177, 0.0
    %v181 = vsel %vm118, %v178, 0
    %v184 = vsel %vm118, %v179, 0
    %186 = vmatprep.subr.mxu0 0.0
    %187 = vmatpush1.msra.mxu0 0.0
    %188 = vmatprep.subr.mxu0 0.0
    %189 = vmatpush1.msra.mxu0 0.0
    %190 = vmatprep.subr.mxu0 0.0
    %191 = vmatpush1.msra.mxu0 0.0
    %192 = vmatprep.subr.mxu0 0.0
    %193 = vmatpush1.msra.mxu0 0.0
    %194 = vmatprep.subr.mxu0 0.0
    %195 = vmatpush1.msra.mxu0 0.0
    %196 = vmatprep.subr.mxu0 0.0
    %197 = vmatpush1.msra.mxu0 0.0
    %198 = vmatprep.subr.mxu0 0.0
    %199 = vmatpush1.msra.mxu0 0.0
    %200 = vmatprep.subr.mxu0 0.0
    %201 = vmatpush1.msra.mxu0 0.0
    %202 = vmatprep.subr.mxu0 0.0
    %203 = vmatpush1.msra.mxu0 0.0
    %204 = vmatprep.subr.mxu0 0.0
    %205 = vmatpush1.msra.mxu0 0.0
    %206 = vmatprep.subr.mxu0 0.0
    %207 = vmatpush1.msra.mxu0 0.0
    %208 = vmatprep.subr.mxu0 0.0
    %209 = vmatpush1.msra.mxu0 0.0
    %210 = vmatprep.subr.mxu0 0.0
    %211 = vmatpush1.msra.mxu0 %v33
    %212 = vmatprep.subr.mxu0 0.0
    %213 = vmatpush1.msra.mxu0 %v32
    %214 = vmatprep.subr.mxu0 0.0
    %215 = vmatpush1.msra.mxu0 %v31
    %216 = vmatprep.subr.mxu0 0.0
    %217 = vmatpush1.msra.mxu0 %v30
    %218 = vmatprep.subr.mxu0 0.0
    %219 = vmatpush2.msra.mxu0 0.0
    %220 = vmatprep.subr.mxu0 0.0
    %221 = vmatpush2.msra.mxu0 0.0
    %222 = vmatprep.subr.mxu0 0.0
    %223 = vmatpush2.msra.mxu0 0.0
    %224 = vmatprep.subr.mxu0 0.0
    %225 = vmatpush2.msra.mxu0 0.0
    %226 = vmatprep.subr.mxu0 0.0
    %227 = vmatpush2.msra.mxu0 0.0
    %228 = vmatprep.subr.mxu0 0.0
    %229 = vmatpush2.msra.mxu0 0.0
    %230 = vmatprep.subr.mxu0 0.0
    %231 = vmatpush2.msra.mxu0 0.0
    %232 = vmatprep.subr.mxu0 0.0
    %233 = vmatpush2.msra.mxu0 0.0
    %234 = vmatprep.subr.mxu0 0.0
    %235 = vmatpush2.msra.mxu0 0.0
    %236 = vmatprep.subr.mxu0 0.0
    %237 = vmatpush2.msra.mxu0 0.0
    %238 = vmatprep.subr.mxu0 0.0
    %239 = vmatpush2.msra.mxu0 0.0
    %240 = vmatprep.subr.mxu0 0.0
    %241 = vmatpush2.msra.mxu0 0.0
    %242 = vmatprep.subr.mxu0 0.0
    %243 = vmatpush2.msra.mxu0 0.0
    %244 = vmatprep.subr.mxu0 0.0
    %245 = vmatpush2.msra.mxu0 0.0
    %246 = vmatprep.subr.mxu0 0.0
    %247 = vmatpush2.msra.mxu0 0.0
    %248 = vmatprep.subr.mxu0 0.0
    %249 = vmatpush2.msra.mxu0 0.0
    %250 = vmatprep.mubr.f32.mxu0 0.0
    %251 = vmatmul.mubr.f32.gmra.mxu0 %v181
    %v252 = vpop.f32.mrf.mxu0
    %v253 = vadd.f32 0.0, %v252
    %v254 = vpop.f32.mrf.mxu0
    %255 = vmatprep.mubr.f32.mxu0 0.0
    %256 = vmatmul.mubr.f32.gmra.mxu0 %v184
    %v257 = vpop.f32.mrf.mxu0
    %v258 = vadd.f32 0.0, %v257
    %v259 = vpop.f32.mrf.mxu0
    %260 = vdwg.mxu0
    %v261 = vsel %vm118, %v253, 0.0
    %v262 = vrot.slane %v261, 4
    %v263 = vadd.f32 %v261, %v262
    %v264 = vrot.slane %v263, 2
    %v265 = vadd.f32 %v263, %v264
    %v266 = vrot.slane %v265, 1
    %v267 = vadd.f32 %v265, %v266
    %v268 = vsel %vm118, %v258, 0.0
    %v269 = vrot.slane %v268, 4
    %v270 = vadd.f32 %v268, %v269
    %v271 = vrot.slane %v270, 2
    %v272 = vadd.f32 %v270, %v271
    %v273 = vrot.slane %v272, 1
    %v274 = vadd.f32 %v272, %v273
    %v275 = vmul.f32 %v267, %v133
    %v276 = vmul.f32 %v274, %v133
    %v277 = vsub.f32 %v253, %v275
    %v278 = vsub.f32 %v258, %v276
    %v279 = vmul.f32 %v277, %v277
    %v280 = vmul.f32 %v278, %v278
    %v281 = vsel %vm118, %v279, 0.0
    %v282 = vrot.slane %v281, 4
    %v283 = vadd.f32 %v281, %v282
    %v284 = vrot.slane %v283, 2
    %v285 = vadd.f32 %v283, %v284
    %v286 = vrot.slane %v285, 1
    %v287 = vadd.f32 %v285, %v286
    %v288 = vsel %vm118, %v280, 0.0
    %v289 = vrot.slane %v288, 4
    %v290 = vadd.f32 %v288, %v289
    %v291 = vrot.slane %v290, 2
    %v292 = vadd.f32 %v290, %v291
    %v293 = vrot.slane %v292, 1
    %v294 = vadd.f32 %v292, %v293
    %v295 = vmul.f32 %v287, %v133
    %v296 = vmul.f32 %v294, %v133
    %v297 = vadd.f32 %v295, 1e-05
    %v298 = vadd.f32 %v296, 1e-05
    %v299 = vrsqrt.pop %v297
    %v300 = vrsqrt.pop %v298
    %v301 = vmul.f32 %v29, %v299
    %v302 = vmul.f32 %v29, %v300
    %v303 = vlaneseq
    %v304 = vshrl.u32 %v303, 7
    %v305 = vsub.s32 2, %v304
    %v306 = vrot.slane %v301, %v305
    %v307 = vlaneseq
    %v308 = vshrl.u32 %v307, 7
    %v309 = vsub.s32 2, %v308
    %v310 = vrot.slane %v302, %v309
    %v311 = vmul.f32 %v277, %v306
    %v312 = vmul.f32 %v278, %v310
    %v313 = vlaneseq
    %v314 = vshrl.u32 %v313, 7
    %v315 = vsub.s32 3, %v314
    %v316 = vrot.slane %v29, %v315
    %v317 = vadd.f32 %v311, %v316
    %v318 = vadd.f32 %v312, %v316
    %v319 = vmax.f32 %v317, 0.0
    %v320 = vmax.f32 %v318, 0.0
    %v321 = vsub.f32 %v319, %v320
    %326 = vrot.lane.b32.xlu0 %v30, 96
    %v327 = vpop.permute.xlu0 %326
    %328 = vrot.lane.b32.xlu0 %v31, 96
    %v329 = vpop.permute.xlu0 %328
    %330 = vrot.lane.b32.xlu0 %v32, 96
    %v331 = vpop.permute.xlu0 %330
    %332 = vrot.lane.b32.xlu0 %v33, 96
    %v333 = vpop.permute.xlu0 %332
    %v339 = vsel %vm118, %v321, 0
    %341 = vmatprep.subr.mxu0 0.0
    %342 = vmatpush1.msra.mxu0 0.0
    %343 = vmatprep.subr.mxu0 0.0
    %344 = vmatpush1.msra.mxu0 0.0
    %345 = vmatprep.subr.mxu0 0.0
    %346 = vmatpush1.msra.mxu0 0.0
    %347 = vmatprep.subr.mxu0 0.0
    %348 = vmatpush1.msra.mxu0 0.0
    %349 = vmatprep.subr.mxu0 0.0
    %350 = vmatpush1.msra.mxu0 0.0
    %351 = vmatprep.subr.mxu0 0.0
    %352 = vmatpush1.msra.mxu0 0.0
    %353 = vmatprep.subr.mxu0 0.0
    %354 = vmatpush1.msra.mxu0 0.0
    %355 = vmatprep.subr.mxu0 0.0
    %356 = vmatpush1.msra.mxu0 0.0
    %357 = vmatprep.subr.mxu0 0.0
    %358 = vmatpush1.msra.mxu0 0.0
    %359 = vmatprep.subr.mxu0 0.0
    %360 = vmatpush1.msra.mxu0 0.0
    %361 = vmatprep.subr.mxu0 0.0
    %362 = vmatpush1.msra.mxu0 0.0
    %363 = vmatprep.subr.mxu0 0.0
    %364 = vmatpush1.msra.mxu0 0.0
    %365 = vmatprep.subr.mxu0 0.0
    %366 = vmatpush1.msra.mxu0 %v333
    %367 = vmatprep.subr.mxu0 0.0
    %368 = vmatpush1.msra.mxu0 %v331
    %369 = vmatprep.subr.mxu0 0.0
    %370 = vmatpush1.msra.mxu0 %v329
    %371 = vmatprep.subr.mxu0 0.0
    %372 = vmatpush1.msra.mxu0 %v327
    %373 = vmatprep.subr.mxu0 0.0
    %374 = vmatpush2.msra.mxu0 0.0
    %375 = vmatprep.subr.mxu0 0.0
    %376 = vmatpush2.msra.mxu0 0.0
    %377 = vmatprep.subr.mxu0 0.0
    %378 = vmatpush2.msra.mxu0 0.0
    %379 = vmatprep.subr.mxu0 0.0
    %380 = vmatpush2.msra.mxu0 0.0
    %381 = vmatprep.subr.mxu0 0.0
    %382 = vmatpush2.msra.mxu0 0.0
    %383 = vmatprep.subr.mxu0 0.0
    %384 = vmatpush2.msra.mxu0 0.0
    %385 = vmatprep.subr.mxu0 0.0
    %386 = vmatpush2.msra.mxu0 0.0
    %387 = vmatprep.subr.mxu0 0.0
    %388 = vmatpush2.msra.mxu0 0.0
    %389 = vmatprep.subr.mxu0 0.0
    %390 = vmatpush2.msra.mxu0 0.0
    %391 = vmatprep.subr.mxu0 0.0
    %392 = vmatpush2.msra.mxu0 0.0
    %393 = vmatprep.subr.mxu0 0.0
    %394 = vmatpush2.msra.mxu0 0.0
    %395 = vmatprep.subr.mxu0 0.0
    %396 = vmatpush2.msra.mxu0 0.0
    %397 = vmatprep.subr.mxu0 0.0
    %398 = vmatpush2.msra.mxu0 0.0
    %399 = vmatprep.subr.mxu0 0.0
    %400 = vmatpush2.msra.mxu0 0.0
    %401 = vmatprep.subr.mxu0 0.0
    %402 = vmatpush2.msra.mxu0 0.0
    %403 = vmatprep.subr.mxu0 0.0
    %404 = vmatpush2.msra.mxu0 0.0
    %405 = vmatprep.mubr.f32.mxu0 0.0
    %406 = vmatmul.mubr.f32.gmra.mxu0 %v339
    %v407 = vpop.f32.mrf.mxu0
    %v408 = vadd.f32 1e-06, %v407
    %v409 = vpop.f32.mrf.mxu0
    %410 = vdwg.mxu0
    %v411 = vmul.f32 %v408, %v408
    %vm412 = vcmask 130048
    %v413 = vsel %vm412, %v411, 0.0
    %414 = vadd.xlane.f32.xlu0 %v413
    %v415 = vpop.xlane.xlu0 %414
    %v416 = vlog2.pop %v415
    %v417 = vmul.f32 %v416, 0.6931472
    %v418 = vmul.f32 %v417, -0.5
    %vm419 = vcmask 7168
    %420 = vst.msk [vmem:[%s3] sm:$0xff] %vm419, %v418
    // Predicated region
    $region18: #{tpu_custom_call.1} parent=1 // pred_check
      _
    $region19: #{tpu_custom_call.1} parent=1 // pred_check_branch
      %422 = sbr.rel (0) target = $region21
    $region20: #{tpu_custom_call.1} parent=1 // pred_region
      _
    $region21: #{tpu_custom_call.1} parent=1 // pred_fallthru
      _
    // Predicated region
    $region22: #{tpu_custom_call.1} parent=1 // pred_check
      _
    $region23: #{tpu_custom_call.1} parent=1 // pred_check_branch
      %424 = sbr.rel (0) target = $region25
    $region24: #{tpu_custom_call.1} parent=1 // pred_region
      _
    $region25: #{tpu_custom_call.1} parent=1 // pred_fallthru
      _
    %425 = vsyncpa [#allocation3], 1

</llo_original>
